<compile_context>
chip_gen: v7x
topology: tpu7x:2x2x1
jax: 0.10.0
libtpu: 0.0.40
codegen_flags: <defaults>
</compile_context>

<pallas_src>
import functools
import math

import jax
import jax.numpy as jnp
from jax.experimental import pallas as pl
from jax.experimental.pallas import tpu as pltpu

LANES = 128
SUBLANES = 8
MAX_TILE_ROWS = 2048     # 2048 x 128 f32 = 1 MiB per input stream per buffer


def _round_up(x: int, m: int) -> int:
    return ((x + m - 1) // m) * m


def _num_tensorcores() -> int:
    """2 on v7x (two TensorCores per chip), 1 on v5e/v6e (and as fallback)."""
    try:
        kind = jax.devices()[0].device_kind.lower()
    except Exception:
        return 1
    return 2 if "v7" in kind else 1


def _pick_geometry(rows_total: int, num_partials: int, gran: int):
    """Tile rows / blocks-per-partial such that no grid step is fully OOB."""
    tile_rows = min(MAX_TILE_ROWS,
                    _round_up(max(pl.cdiv(rows_total, num_partials), 1), gran))
    blocks_per_core = pl.cdiv(rows_total, num_partials * tile_rows)
    if (num_partials > 1
            and (num_partials * blocks_per_core - 1) * tile_rows >= rows_total):
        return None   # last grid step would map entirely past the array
    return tile_rows, blocks_per_core


def _log_cosh_kernel(pred_ref, true_ref, out_ref, *,
                     rows_full, rem, tile_rows, blocks_per_core):
    c = pl.program_id(0)      # per-TensorCore partial (size 1 on v5e/v6e)
    i = pl.program_id(1)      # reduction ("arbitrary") axis

    @pl.when(i == 0)
    def _():
        out_ref[...] = jnp.zeros_like(out_ref)

    # Cast each operand to f32 BEFORE subtracting (keeps cancellation bits for
    # low-precision inputs; the DMA already moved them in their narrow dtype).
    d = pred_ref[...].astype(jnp.float32) - true_ref[...].astype(jnp.float32)
    # log(cosh(d)) + log(2) == |d| + log1p(exp(-2|d|))   (numerically stable;
    # the constant -log(2) is applied once on the host).
    ad = jnp.abs(d)
    lc = ad + jnp.log1p(jnp.exp(-2.0 * ad))

    def _accumulate(vals):
        # Fold rows into a vreg-shaped (8, 128) partial (VPU adds); the full
        # cross-lane/sublane reduce + /N happens outside the kernel.
        part = jnp.sum(vals.reshape(tile_rows // SUBLANES, SUBLANES, LANES),
                       axis=0)
        out_ref[...] += part.reshape(1, SUBLANES, LANES)

    start_row = (c * blocks_per_core + i) * tile_rows
    boundary = start_row + tile_rows > rows_full

    @pl.when(jnp.logical_not(boundary))
    def _():                              # interior blocks: pure streaming body
        _accumulate(lc)

    @pl.when(boundary)
    def _():                              # boundary block only: mask invalid data
        local_limit = rows_full - start_row          # block-local, overflow-safe
        row_ids = jax.lax.broadcasted_iota(jnp.int32, (tile_rows, LANES), 0)
        valid = row_ids < local_limit
        if rem:                                      # static: lane-pad of last row
            lane_ids = jax.lax.broadcasted_iota(jnp.int32, (tile_rows, LANES), 1)
            valid = valid | ((row_ids == local_limit) & (lane_ids < rem))
        _accumulate(jnp.where(valid, lc, 0.0))


def log_cosh_loss(y_pred: jax.Array, y_true: jax.Array) -> jax.Array:
    assert y_pred.shape == y_true.shape
    n_valid = int(y_pred.size)
    if n_valid == 0:
        return jnp.float32(float("nan"))

    rows_full, rem = divmod(n_valid, LANES)
    rows_total = rows_full + (1 if rem else 0)

    # Minimum sublane granularity by dtype: f32 -> 8, bf16/f16 -> 16, int8 -> 32.
    gran = SUBLANES * max(1,
                          4 // jnp.dtype(y_pred.dtype).itemsize,
                          4 // jnp.dtype(y_true.dtype).itemsize)

    num_partials = _num_tensorcores()
    geo = _pick_geometry(rows_total, num_partials, gran)
    if geo is None:
        num_partials = 1
        geo = _pick_geometry(rows_total, 1, gran)
    tile_rows, blocks_per_core = geo

    # Keep the original dtype through the DMA; zero-copy reshape when the
    # element count is lane (128) aligned.  Only the lane-misaligned tail
    # triggers a pad, and only by < 128 elements (masked in-kernel).
    flat_pred = y_pred.reshape(-1)
    flat_true = y_true.reshape(-1)
    if rem:
        pad = LANES - rem
        flat_pred = jnp.pad(flat_pred, (0, pad))
        flat_true = jnp.pad(flat_true, (0, pad))
    pred2d = flat_pred.reshape(rows_total, LANES)
    true2d = flat_true.reshape(rows_total, LANES)

    kernel = functools.partial(
        _log_cosh_kernel,
        rows_full=rows_full,
        rem=rem,
        tile_rows=tile_rows,
        blocks_per_core=blocks_per_core,
    )

    in_map = lambda c, i, bpc=blocks_per_core: (c * bpc + i, 0)

    if num_partials > 1:
        # v7x: genuinely shard the leading axis across the two TensorCores.
        dim_sem = (pltpu.CORE_PARALLEL, pltpu.ARBITRARY)
    else:
        dim_sem = ("arbitrary", "arbitrary")

    bytes_in = n_valid * (jnp.dtype(y_pred.dtype).itemsize
                          + jnp.dtype(y_true.dtype).itemsize)
    cost = pl.CostEstimate(
        flops=8 * n_valid,
        transcendentals=2 * n_valid,
        bytes_accessed=bytes_in + num_partials * SUBLANES * LANES * 4,
    )

    partials = pl.pallas_call(
        kernel,
        out_shape=jax.ShapeDtypeStruct((num_partials, SUBLANES, LANES),
                                       jnp.float32),
        grid_spec=pltpu.PrefetchScalarGridSpec(
            num_scalar_prefetch=0,
            grid=(num_partials, blocks_per_core),
            in_specs=[
                pl.BlockSpec((tile_rows, LANES), in_map),
                pl.BlockSpec((tile_rows, LANES), in_map),
            ],
            out_specs=pl.BlockSpec((1, SUBLANES, LANES),
                                   lambda c, i: (c, 0, 0)),
        ),
        compiler_params=pltpu.CompilerParams(
            dimension_semantics=dim_sem,
            vmem_limit_bytes=48 * 1024 * 1024,
        ),
        cost_estimate=cost,
    )(pred2d, true2d)

    # Final cross-lane reduce, mean, and the folded-out -log(2); keep f32
    # (the reduction is not truncated back to the input dtype).
    loss = jnp.sum(partials) / n_valid - math.log(2.0)
    return loss


class LogCoshLoss:
    def __call__(self, y_pred, y_true):
        return log_cosh_loss(y_pred, y_true)


def _reference(y_pred, y_true):
    d = (y_pred - y_true).astype(jnp.float32)
    return jnp.mean(d + jax.nn.softplus(-2.0 * d) - math.log(2.0))


if __name__ == "__main__":
    key = jax.random.PRNGKey(0)
    k1, k2, k3, k4 = jax.random.split(key, 4)

    # NCHW-shaped inputs (batch=2, channels=4, spatial=16x16) — lane aligned.
    y_pred = jax.random.normal(k1, (2, 4, 16, 16), dtype=jnp.float32)
    y_true = jax.random.normal(k2, (2, 4, 16, 16), dtype=jnp.float32)
    loss = LogCoshLoss()(y_pred, y_true)
    jax.block_until_ready(loss)
    ref = _reference(y_pred, y_true)
    assert jnp.allclose(loss, ref, atol=1e-5, rtol=1e-5), (loss, ref)

    # Lane-misaligned shape exercises the boundary-block mask path.
    yp2 = jax.random.normal(k3, (3, 5, 7), dtype=jnp.float32)
    yt2 = jax.random.normal(k4, (3, 5, 7), dtype=jnp.float32)
    loss2 = LogCoshLoss()(yp2, yt2)
    jax.block_until_ready(loss2)
    ref2 = _reference(yp2, yt2)
    assert jnp.allclose(loss2, ref2, atol=1e-5, rtol=1e-5), (loss2, ref2)

    print("KERNEL_OK")
</pallas_src>

<mosaic_0001>
module attributes {stable_mosaic.version = 11 : i64} {
  func.func @_log_cosh_kernel(%arg0: i32, %arg1: i32, %arg2: memref<16x128xf32, #tpu.memory_space<vmem>>, %arg3: memref<16x128xf32, #tpu.memory_space<vmem>>, %arg4: memref<1x8x128xf32, #tpu.memory_space<vmem>>) attributes {dimension_semantics = [#tpu.dimension_semantics<arbitrary>, #tpu.dimension_semantics<arbitrary>], iteration_bounds = array<i64: 1, 1>, scalar_prefetch = 0 : i64, scratch_operands = 0 : i64, tpu.core_type = #tpu.core_type<tc>, window_params = [{transform_indices = @transform_0, window_bounds = array<i64: 16, 128>}, {transform_indices = @transform_1, window_bounds = array<i64: 16, 128>}, {transform_indices = @transform_2, window_bounds = array<i64: 1, 8, 128>}]} {
    %c0_i32 = arith.constant 0 : i32
    %0 = arith.cmpi eq, %arg1, %c0_i32 : i32
    %1 = arith.extui %0 : i1 to i32
    %c0_i32_0 = arith.constant 0 : i32
    %2 = arith.cmpi ne, %1, %c0_i32_0 : i32
    scf.if %2 {
      %cst_8 = arith.constant 0.000000e+00 : f32
      %22 = vector.broadcast %cst_8 : f32 to vector<1x8x128xf32>
      %c0_9 = arith.constant 0 : index
      %c0_10 = arith.constant 0 : index
      %c0_11 = arith.constant 0 : index
      %23 = vector.load %arg4[%c0_9, %c0_10, %c0_11] : memref<1x8x128xf32, #tpu.memory_space<vmem>>, vector<1x8x128xf32>
      tpu.vector_store %arg4[%c0_9, %c0_10, %c0_11], %22 {strides = array<i32>} : memref<1x8x128xf32, #tpu.memory_space<vmem>>, vector<1x8x128xf32>,
    } else {
    }
    %c0 = arith.constant 0 : index
    %c0_1 = arith.constant 0 : index
    %3 = vector.load %arg2[%c0, %c0_1] : memref<16x128xf32, #tpu.memory_space<vmem>>, vector<16x128xf32>
    %c0_2 = arith.constant 0 : index
    %c0_3 = arith.constant 0 : index
    %4 = vector.load %arg3[%c0_2, %c0_3] : memref<16x128xf32, #tpu.memory_space<vmem>>, vector<16x128xf32>
    %5 = arith.subf %3, %4 : vector<16x128xf32>
    %6 = math.absf %5 : vector<16x128xf32>
    %cst = arith.constant -2.000000e+00 : f32
    %7 = vector.broadcast %cst : f32 to vector<16x128xf32>
    %8 = arith.mulf %7, %6 : vector<16x128xf32>
    %9 = math.exp %8 : vector<16x128xf32>
    %10 = math.log1p %9 : vector<16x128xf32>
    %11 = arith.addf %6, %10 : vector<16x128xf32>
    %c1_i32 = arith.constant 1 : i32
    %12 = arith.muli %arg0, %c1_i32 : i32
    %13 = arith.addi %12, %arg1 : i32
    %c16_i32 = arith.constant 16 : i32
    %14 = arith.muli %13, %c16_i32 : i32
    %c16_i32_4 = arith.constant 16 : i32
    %15 = arith.addi %14, %c16_i32_4 : i32
    %c16_i32_5 = arith.constant 16 : i32
    %16 = arith.cmpi sgt, %15, %c16_i32_5 : i32
    %true = arith.constant true
    %17 = arith.xori %16, %true : i1
    %18 = arith.extui %17 : i1 to i32
    %c0_i32_6 = arith.constant 0 : i32
    %19 = arith.cmpi ne, %18, %c0_i32_6 : i32
    scf.if %19 {
      %22 = vector.shape_cast %11 : vector<16x128xf32> to vector<2x8x128xf32>
      %cst_8 = arith.constant dense<0.000000e+00> : vector<8x128xf32>
      %23 = vector.multi_reduction <add>, %22, %cst_8 [0] : vector<2x8x128xf32> to vector<8x128xf32>
      %c0_9 = arith.constant 0 : index
      %c0_10 = arith.constant 0 : index
      %c0_11 = arith.constant 0 : index
      %24 = vector.load %arg4[%c0_9, %c0_10, %c0_11] : memref<1x8x128xf32, #tpu.memory_space<vmem>>, vector<1x8x128xf32>
      %25 = vector.shape_cast %23 : vector<8x128xf32> to vector<1x8x128xf32>
      %26 = arith.addf %24, %25 : vector<1x8x128xf32>
      %c0_12 = arith.constant 0 : index
      %c0_13 = arith.constant 0 : index
      %c0_14 = arith.constant 0 : index
      %27 = vector.load %arg4[%c0_12, %c0_13, %c0_14] : memref<1x8x128xf32, #tpu.memory_space<vmem>>, vector<1x8x128xf32>
      tpu.vector_store %arg4[%c0_12, %c0_13, %c0_14], %26 {strides = array<i32>} : memref<1x8x128xf32, #tpu.memory_space<vmem>>, vector<1x8x128xf32>,
    } else {
    }
    %20 = arith.extui %16 : i1 to i32
    %c0_i32_7 = arith.constant 0 : i32
    %21 = arith.cmpi ne, %20, %c0_i32_7 : i32
    scf.if %21 {
      %c16_i32_8 = arith.constant 16 : i32
      %22 = arith.subi %c16_i32_8, %14 : i32
      %23 = tpu.iota {dimensions = array<i32: 0>} : vector<16x128xi32>
      %24 = vector.broadcast %22 : i32 to vector<16x128xi32>
      %25 = arith.cmpi slt, %23, %24 : vector<16x128xi32>
      %cst_9 = arith.constant 0.000000e+00 : f32
      %26 = vector.broadcast %cst_9 : f32 to vector<16x128xf32>
      %27 = arith.select %25, %11, %26 : vector<16x128xi1>, vector<16x128xf32>
      %28 = vector.shape_cast %27 : vector<16x128xf32> to vector<2x8x128xf32>
      %cst_10 = arith.constant dense<0.000000e+00> : vector<8x128xf32>
      %29 = vector.multi_reduction <add>, %28, %cst_10 [0] : vector<2x8x128xf32> to vector<8x128xf32>
      %c0_11 = arith.constant 0 : index
      %c0_12 = arith.constant 0 : index
      %c0_13 = arith.constant 0 : index
      %30 = vector.load %arg4[%c0_11, %c0_12, %c0_13] : memref<1x8x128xf32, #tpu.memory_space<vmem>>, vector<1x8x128xf32>
      %31 = vector.shape_cast %29 : vector<8x128xf32> to vector<1x8x128xf32>
      %32 = arith.addf %30, %31 : vector<1x8x128xf32>
      %c0_14 = arith.constant 0 : index
      %c0_15 = arith.constant 0 : index
      %c0_16 = arith.constant 0 : index
      %33 = vector.load %arg4[%c0_14, %c0_15, %c0_16] : memref<1x8x128xf32, #tpu.memory_space<vmem>>, vector<1x8x128xf32>
      tpu.vector_store %arg4[%c0_14, %c0_15, %c0_16], %32 {strides = array<i32>} : memref<1x8x128xf32, #tpu.memory_space<vmem>>, vector<1x8x128xf32>,
    } else {
    }
    return
  }
  func.func @transform_0(%arg0: i32, %arg1: i32) -> (i32, i32) {
    %c1_i32 = arith.constant 1 : i32
    %0 = arith.muli %arg0, %c1_i32 : i32
    %1 = arith.addi %0, %arg1 : i32
    %c0_i32 = arith.constant 0 : i32
    %c0_i32_0 = arith.constant 0 : i32
    return %1, %c0_i32 : i32, i32
  }
  func.func @transform_1(%arg0: i32, %arg1: i32) -> (i32, i32) {
    %c1_i32 = arith.constant 1 : i32
    %0 = arith.muli %arg0, %c1_i32 : i32
    %1 = arith.addi %0, %arg1 : i32
    %c0_i32 = arith.constant 0 : i32
    %c0_i32_0 = arith.constant 0 : i32
    return %1, %c0_i32 : i32, i32
  }
  func.func @transform_2(%arg0: i32, %arg1: i32) -> (i32, i32, i32) {
    %c0_i32 = arith.constant 0 : i32
    %c0_i32_0 = arith.constant 0 : i32
    %c0_i32_1 = arith.constant 0 : i32
    return %arg0, %c0_i32, %c0_i32_0 : i32, i32, i32
  }
}

</mosaic_0001>

<llo_original>
// kernel: tpu_custom_call.1
$region0: #{tpu_custom_call.1}
  #allocation0 [shape = 'u32[]', space=smem, size = 0x4, offset = 0x4, fixed_abs, tag = 'smem constant byte address 0x4 - core index']
  #allocation1 [shape = 'u32[144,128]{1,0:T(1,128)}', space=vmem, size = 0x12000, scoped, tag = 'internal scratch']
  %s0 = inlined_call_operand.hbm [shape: f32[16,128], index: 0, kind: input, shape index: {}]
  %s1 = inlined_call_operand.hbm [shape: f32[16,128], index: 1, kind: input, shape index: {}]
  %s2 = inlined_call_operand.hbm [shape: f32[1,8,128], index: 2, kind: output, shape index: {}]
  %s3 = sld [smem:[#allocation0]]
  $region38: #{tpu_custom_call.1} parent=0
    _
  %s5 = ssub.s32 1, %s3
  %s6 = scalar_select 0, %s5, %s3
  $region1: #{tpu_custom_call.1} parent=0
    #allocation2 [shape = 'u8[8192]{0}', space=vmem, size = 0x2000, scoped, tag = 'input window, operand 0, single buffered']
    #allocation3 [shape = 's32[1]{0}', space=sflag, size = 0x4, scoped, tag = 'scoped memory for tpu_custom_call.1']
    #allocation4 [shape = 's32[1]{0}', space=sflag, size = 0x4, scoped, tag = 'scoped memory for tpu_custom_call.1']
    #allocation5 [shape = 'u8[8192]{0}', space=vmem, size = 0x2000, scoped, tag = 'input window, operand 1, single buffered']
    #allocation6 [shape = 's32[1]{0}', space=sflag, size = 0x4, scoped, tag = 'scoped memory for tpu_custom_call.1']
    #allocation7 [shape = 'u8[4096]{0}', space=vmem, size = 0x1000, scoped, tag = 'output window, operand 0, single buffered']
    %7 = vsyncpa [#allocation3], 0
    %8 = vsyncpa [#allocation6], 0
    %9 = vsyncpa [#allocation4], 0
    // Predicated region
    $region2: #{tpu_custom_call.1} parent=1 // pred_check
      _
    $region3: #{tpu_custom_call.1} parent=1 // pred_check_branch
      %11 = sbr.rel (0) target = $region5
    $region4: #{tpu_custom_call.1} parent=1 // pred_region
      %s12 = sadd.s32 0, 0
      %s13 = smul.u32 2, %s12
      %s15 = ssub.s32 256, 256
      %16 = vsyncadd [#allocation3], %s15
      %s17 = smul.addr %s13, 128
      %s18 = scalar_lea.hbm %s0, %s17
      %s19 = sshll.u32 [#allocation2], 4
      %s20 = int_to_ptr.vmem [resolvable:$true] %s19
      %25 = dma.hbm_to_vmem [thread:$0]  %s18, 256, %s20, [#allocation3], 128, 128, 8
    $region5: #{tpu_custom_call.1} parent=1 // pred_fallthru
      _
    // Predicated region
    $region6: #{tpu_custom_call.1} parent=1 // pred_check
      _
    $region7: #{tpu_custom_call.1} parent=1 // pred_check_branch
      %27 = sbr.rel (0) target = $region9
    $region8: #{tpu_custom_call.1} parent=1 // pred_region
      %s28 = sadd.s32 0, 0
      %s29 = smul.u32 2, %s28
      %s31 = ssub.s32 256, 256
      %32 = vsyncadd [#allocation6], %s31
      %s33 = smul.addr %s29, 128
      %s34 = scalar_lea.hbm %s1, %s33
      %s35 = sshll.u32 [#allocation5], 4
      %s36 = int_to_ptr.vmem [resolvable:$true] %s35
      %41 = dma.hbm_to_vmem [thread:$0]  %s34, 256, %s36, [#allocation6], 128, 128, 8
    $region9: #{tpu_custom_call.1} parent=1 // pred_fallthru
      _
    // Predicated region
    $region10: #{tpu_custom_call.1} parent=1 // pred_check
      _
    $region11: #{tpu_custom_call.1} parent=1 // pred_check_branch
      %43 = sbr.rel (0) target = $region13
    $region12: #{tpu_custom_call.1} parent=1 // pred_region
      %44 = dma.done [#allocation3], 256
    $region13: #{tpu_custom_call.1} parent=1 // pred_fallthru
      _
    // Predicated region
    $region14: #{tpu_custom_call.1} parent=1 // pred_check
      _
    $region15: #{tpu_custom_call.1} parent=1 // pred_check_branch
      %46 = sbr.rel (0) target = $region17
    $region16: #{tpu_custom_call.1} parent=1 // pred_region
      %47 = dma.done [#allocation6], 256
    $region17: #{tpu_custom_call.1} parent=1 // pred_fallthru
      _
    %s48 = sadd.s32 0, 0
    %s49 = smul.u32 2, %s48
    %s50 = sadd.s32 0, 0
    %s51 = smul.u32 2, %s50
    %p52 = scmp.eq.s32.totalorder 0, 0
    // Predicated region
    $region18: #{tpu_custom_call.1} parent=1 // pred_check
      %p53 = pneg %p52
    $region19: #{tpu_custom_call.1} parent=1 // pred_check_branch
      %55 = sbr.rel (%p53) target = $region21
    $region20: #{tpu_custom_call.1} parent=1 // pred_region
      %56 = vst [vmem:[#allocation7] sm:$0xff] 0.0
    $region21: #{tpu_custom_call.1} parent=1 // pred_fallthru
      _
    %v57 = vld [vmem:[#allocation2] sm:$0xff]
    %v58 = vld [vmem:[#allocation2 + $0x8] sm:$0xff]
    %v59 = vld [vmem:[#allocation5] sm:$0xff]
    %v60 = vld [vmem:[#allocation5 + $0x8] sm:$0xff]
    %v61 = vsub.f32 %v57, %v59
    %v62 = vsub.f32 %v58, %v60
    %v63 = vand.u32 2147483647, %v61
    %v64 = vand.u32 2147483647, %v62
    %v65 = vmul.f32 %v63, -2.0
    %v66 = vmul.f32 %v64, -2.0
    %v67 = vmul.f32 %v65, 1.442695
    %v68 = vpow.pop %v67
    %v69 = vmul.f32 %v66, 1.442695
    %v70 = vpow.pop %v69
    %v71 = vadd.f32 %v68, 1.0
    %v72 = vlog2.pop %v71
    %v73 = vmul.f32 %v72, 0.6931472
    %v74 = vmul.f32 -0.5, %v68
    %v75 = vadd.f32 %v74, 1.0
    %v76 = vmul.f32 %v75, %v68
    %v77 = vand.u32 2147483647, %v68
    %vm78 = vcmp.lt.f32.partialorder %v77, 0.0004427343
    %v79 = vsel %vm78, %v76, %v73
    %v80 = vadd.f32 %v70, 1.0
    %v81 = vlog2.pop %v80
    %v82 = vmul.f32 %v81, 0.6931472
    %v83 = vmul.f32 -0.5, %v70
    %v84 = vadd.f32 %v83, 1.0
    %v85 = vmul.f32 %v84, %v70
    %v86 = vand.u32 2147483647, %v70
    %vm87 = vcmp.lt.f32.partialorder %v86, 0.0004427343
    %v88 = vsel %vm87, %v85, %v82
    %v89 = vadd.f32 %v63, %v79
    %v90 = vadd.f32 %v64, %v88
    %s91 = sadd.s32 0, 0
    %s92 = smul.u32 %s91, 16
    %s93 = sadd.s32 %s92, 16
    %p94 = scmp.gt.s32.totalorder %s93, 16
    %p95 = scmp.le.s32.totalorder %s93, 16
    // Predicated region
    $region22: #{tpu_custom_call.1} parent=1 // pred_check
      %p96 = pneg %p95
    $region23: #{tpu_custom_call.1} parent=1 // pred_check_branch
      %98 = sbr.rel (%p96) target = $region25
    $region24: #{tpu_custom_call.1} parent=1 // pred_region
      %v99 = vadd.f32 %v89, %v90
      %v100 = vld [vmem:[#allocation7] sm:$0xff]
      %v101 = vadd.f32 %v100, %v99
      %102 = vst [vmem:[#allocation7] sm:$0xff] %v101
    $region25: #{tpu_custom_call.1} parent=1 // pred_fallthru
      _
    // Predicated region
    $region26: #{tpu_custom_call.1} parent=1 // pred_check
      %p103 = pneg %p94
    $region27: #{tpu_custom_call.1} parent=1 // pred_check_branch
      %105 = sbr.rel (%p103) target = $region29
    $region28: #{tpu_custom_call.1} parent=1 // pred_region
      %s106 = ssub.s32 16, %s92
      %v107 = vlaneseq
      %v108 = vshrl.u32 %v107, 7
      %v109 = vadd.s32 %v108, 8
      %v110 = vstv %s106
      %vm111 = vcmp.lt.s32.totalorder %v108, %v110
      %vm112 = vcmp.lt.s32.totalorder %v109, %v110
      %v113 = vsel %vm111, %v89, 0.0
      %v114 = vsel %vm112, %v90, 0.0
      %v115 = vadd.f32 %v113, %v114
      %v116 = vld [vmem:[#allocation7] sm:$0xff]
      %v117 = vadd.f32 %v116, %v115
      %118 = vst [vmem:[#allocation7] sm:$0xff] %v117
    $region29: #{tpu_custom_call.1} parent=1 // pred_fallthru
      _
    // Predicated region
    $region30: #{tpu_custom_call.1} parent=1 // pred_check
      _
    $region31: #{tpu_custom_call.1} parent=1 // pred_check_branch
      %120 = sbr.rel (0) target = $region33
    $region32: #{tpu_custom_call.1} parent=1 // pred_region
      %s122 = ssub.s32 128, 128
      %123 = vsyncadd [#allocation4], %s122
      %s125 = sshll.u32 [#allocation7], 4
      %s126 = int_to_ptr.vmem [resolvable:$true] %s125
      %128 = dma.vmem_to_hbm [thread:$0]  %s126, 128, %s2, [#allocation4]
    $region33: #{tpu_custom_call.1} parent=1 // pred_fallthru
      _
    // Predicated region
    $region34: #{tpu_custom_call.1} parent=1 // pred_check
      _
    $region35: #{tpu_custom_call.1} parent=1 // pred_check_branch
      %130 = sbr.rel (0) target = $region37
    $region36: #{tpu_custom_call.1} parent=1 // pred_region
      %131 = dma.done [#allocation4], 128
    $region37: #{tpu_custom_call.1} parent=1 // pred_fallthru
      _
    %132 = vsyncpa [#allocation3], 1
    %133 = vsyncpa [#allocation6], 1
    %134 = vsyncpa [#allocation4], 1

</llo_original>
